<compile_context>
chip_gen: v5e
topology: v5e:2x2
jax: 0.10.0
libtpu: 0.0.40
codegen_flags: <defaults>
</compile_context>

<pallas_src>
import math

import jax
import jax.numpy as jnp
from jax.experimental import pallas as pl
from jax.experimental.pallas import tpu as pltpu


# ----------------------------------------------------------------------------
# Kernel
# ----------------------------------------------------------------------------
def _make_mlp_kernel(num_hidden_layers: int):
    """Fused MLP kernel.

    Ref order: (x, w0, b0, w1, b1, ..., w_out_row, b_out, out)
      x         : (TB, d_in)    bf16  state tile, native row-major layout
      w_i       : (d_out, d_in) bf16  hidden weights (transposed vs. PyTorch)
      b_i       : (d_out, 1)    f32
      w_out_row : (1, d_last)   bf16
      b_out     : (1, 1)        f32
      out       : (1, TB)       f32   batch on the 128-lane axis
    """

    def kernel(x_ref, *refs):
        out_ref = refs[-1]
        p = refs[:-1]

        # Layer 1: contract the (TB, d_in) state tile over features with an
        # NT dot_general -> (d_out, TB).  Batch lands on lanes with no
        # wrapper-side transpose.  bf16 operands on the MXU, f32 accumulation.
        h = jax.lax.dot_general(
            p[0][...], x_ref[...],
            dimension_numbers=(((1,), (1,)), ((), ())),
            preferred_element_type=jnp.float32)              # (h0, TB) f32
        h = jnp.maximum(h + p[1][...], 0.0)                  # bias + ReLU (f32 VPU)

        # Remaining hidden layers: plain NN matmuls, batch stays on lanes.
        for i in range(1, num_hidden_layers):
            w = p[2 * i][...]                                # (d_out, d_in) bf16
            b = p[2 * i + 1][...]                            # (d_out, 1) f32
            h = jnp.dot(w, h.astype(jnp.bfloat16),
                        preferred_element_type=jnp.float32)
            h = jnp.maximum(h + b, 0.0)

        # Final Linear(d_last, 1): 1-row matmul on the (near-idle) MXU instead
        # of a VPU multiply + XLU sublane reduce.
        w_row = p[-2][...]                                   # (1, d_last) bf16
        b_out = p[-1][...]                                   # (1, 1) f32
        out_ref[...] = jnp.dot(w_row, h.astype(jnp.bfloat16),
                               preferred_element_type=jnp.float32) + b_out

    return kernel


# ----------------------------------------------------------------------------
# Batch-axis dimension semantics (CORE_PARALLEL on v7x if accepted)
# ----------------------------------------------------------------------------
_CORE_PARALLEL = getattr(pltpu, "CORE_PARALLEL", None)
_BATCH_SEMANTICS = None  # resolved once per process


def _batch_dim_semantics():
    """CORE_PARALLEL if this chip/compiler accepts it, else "parallel"."""
    global _BATCH_SEMANTICS
    if _BATCH_SEMANTICS is not None:
        return _BATCH_SEMANTICS

    _BATCH_SEMANTICS = "parallel"
    if _CORE_PARALLEL is not None:
        def _probe_kernel(x_ref, o_ref):
            o_ref[...] = x_ref[...]

        probe = pl.pallas_call(
            _probe_kernel,
            out_shape=jax.ShapeDtypeStruct((16, 128), jnp.float32),
            grid_spec=pltpu.PrefetchScalarGridSpec(
                num_scalar_prefetch=0,
                grid=(2,),
                in_specs=[pl.BlockSpec((8, 128), lambda i: (i, 0))],
                out_specs=pl.BlockSpec((8, 128), lambda i: (i, 0))),
            compiler_params=pltpu.CompilerParams(
                dimension_semantics=(_CORE_PARALLEL,)))
        try:
            jax.jit(probe).lower(
                jax.ShapeDtypeStruct((16, 128), jnp.float32)).compile()
            _BATCH_SEMANTICS = _CORE_PARALLEL
        except Exception:
            pass  # single-TC chip or compiler without core_parallel support
    return _BATCH_SEMANTICS


# ----------------------------------------------------------------------------
# Wrapper
# ----------------------------------------------------------------------------
def critic_forward(state, params, *, batch_tile=8192):
    """CriticNetwork forward pass in a single fused Pallas kernel.

    state:  (B, input_dim) float
    params: list of (w, b) with w shape (d_in, d_out), b shape (d_out,)
            (PyTorch layout: y = x @ w + b)
    returns (B, 1) float32
    """
    batch, input_dim = state.shape
    num_hidden = len(params) - 1
    assert num_hidden >= 1, "CriticNetwork needs at least one hidden layer"

    # Batch rides the 128-lane axis of the activations: tile is a multiple of
    # 128 and no larger than the (128-rounded) batch itself.
    tb = min(batch_tile, pl.cdiv(batch, 128) * 128)
    tb = max(128, (tb // 128) * 128)
    b_pad = pl.cdiv(batch, tb) * tb
    n_tiles = b_pad // tb

    # Stream the state in its native (B, d_in) layout (no wrapper transpose /
    # extra HBM pass); bf16 halves the dominant HBM read.  Zero-pad rows up to
    # a whole number of tiles; padded rows only affect their own (discarded)
    # output columns.
    x = state.astype(jnp.bfloat16)
    if b_pad != batch:
        x = jnp.pad(x, ((0, b_pad - batch), (0, 0)))

    # Params packed for the batch-in-lanes layout.  Each is a few KiB and
    # stays VMEM-resident across the whole grid (constant index_map -> the
    # pipeline revisit optimization skips per-step re-DMA).
    flat_params = []
    for i, (w, b) in enumerate(params):
        if i < num_hidden:
            flat_params.append(w.T.astype(jnp.bfloat16))               # (d_out, d_in)
            flat_params.append(b.reshape(-1, 1).astype(jnp.float32))   # (d_out, 1)
        else:
            flat_params.append(w.reshape(1, -1).astype(jnp.bfloat16))  # (1, d_last)
            flat_params.append(b.reshape(1, 1).astype(jnp.float32))    # (1, 1)

    in_specs = [pl.BlockSpec((tb, input_dim), lambda i: (i, 0))]        # streamed
    for p in flat_params:
        in_specs.append(pl.BlockSpec(p.shape, lambda i: (0, 0)))        # resident
    out_specs = pl.BlockSpec((1, tb), lambda i: (0, i))                 # lane-dense

    dim_sem = _batch_dim_semantics() if n_tiles > 1 else "arbitrary"

    out_t = pl.pallas_call(
        _make_mlp_kernel(num_hidden),
        out_shape=jax.ShapeDtypeStruct((1, b_pad), jnp.float32),
        grid_spec=pltpu.PrefetchScalarGridSpec(
            num_scalar_prefetch=0,
            grid=(n_tiles,),
            in_specs=in_specs,
            out_specs=out_specs,
        ),
        compiler_params=pltpu.CompilerParams(
            dimension_semantics=(dim_sem,),
            vmem_limit_bytes=32 * 1024 * 1024),
    )(x, *flat_params)

    return out_t[:, :batch].T                                           # (B, 1)


# ----------------------------------------------------------------------------
# Init + reference
# ----------------------------------------------------------------------------
def init_critic_params(key, input_dim, hidden_dims):
    """PyTorch nn.Linear-style init (uniform +-1/sqrt(fan_in)).

    Weights stored as (d_in, d_out) (PyTorch W.T), biases as (d_out,).
    """
    dims = [input_dim] + list(hidden_dims) + [1]
    params = []
    for i in range(len(dims) - 1):
        d_in, d_out = dims[i], dims[i + 1]
        key, kw, kb = jax.random.split(key, 3)
        bound = 1.0 / math.sqrt(d_in)
        w = jax.random.uniform(kw, (d_in, d_out), jnp.float32, -bound, bound)
        b = jax.random.uniform(kb, (d_out,), jnp.float32, -bound, bound)
        params.append((w, b))
    return params


def critic_reference(state, params):
    """Pure-JAX f32 reference for correctness checking."""
    h = state
    for i, (w, b) in enumerate(params):
        h = h @ w + b
        if i < len(params) - 1:
            h = jnp.maximum(h, 0.0)
    return h


if __name__ == "__main__":
    # Pendulum-v1: state dim = 3, hidden [32, 32].  bf16 MXU path -> compare
    # against the f32 reference with a correspondingly relaxed tolerance.
    input_dim = 3
    hidden_dims = [32, 32]
    ATOL = RTOL = 5e-2

    key = jax.random.PRNGKey(0)
    key, k_state = jax.random.split(key)
    state = jax.random.normal(k_state, (8, input_dim), jnp.float32)
    params = init_critic_params(key, input_dim, hidden_dims)

    out = jax.block_until_ready(critic_forward(state, params))
    ref = critic_reference(state, params)
    assert out.shape == (8, 1), out.shape
    assert jnp.allclose(out, ref, atol=ATOL, rtol=RTOL), (out, ref)

    # Multi-tile grid + padded-tail path (exercises CORE_PARALLEL when
    # available, plus the row-pad slice-off).
    key, k2 = jax.random.split(key)
    state2 = jax.random.normal(k2, (300, input_dim), jnp.float32)
    out2 = jax.block_until_ready(critic_forward(state2, params, batch_tile=128))
    ref2 = critic_reference(state2, params)
    assert out2.shape == (300, 1), out2.shape
    assert jnp.allclose(out2, ref2, atol=ATOL, rtol=RTOL)

    # Larger single tile with the default (raised) batch_tile.
    key, k3 = jax.random.split(key)
    state3 = jax.random.normal(k3, (2048, input_dim), jnp.float32)
    out3 = jax.block_until_ready(critic_forward(state3, params))
    ref3 = critic_reference(state3, params)
    assert out3.shape == (2048, 1), out3.shape
    assert jnp.allclose(out3, ref3, atol=ATOL, rtol=RTOL)

    print("KERNEL_OK")
</pallas_src>

<mosaic_0001>
module attributes {stable_mosaic.version = 11 : i64} {
  func.func @kernel(%arg0: i32, %arg1: memref<128x3xbf16, #tpu.memory_space<vmem>>, %arg2: memref<32x3xbf16, #tpu.memory_space<vmem>>, %arg3: memref<32x1xf32, #tpu.memory_space<vmem>>, %arg4: memref<32x32xbf16, #tpu.memory_space<vmem>>, %arg5: memref<32x1xf32, #tpu.memory_space<vmem>>, %arg6: memref<1x32xbf16, #tpu.memory_space<vmem>>, %arg7: memref<1x1xf32, #tpu.memory_space<vmem>>, %arg8: memref<1x128xf32, #tpu.memory_space<vmem>>) attributes {dimension_semantics = [#tpu.dimension_semantics<arbitrary>], iteration_bounds = array<i64: 1>, scalar_prefetch = 0 : i64, scratch_operands = 0 : i64, tpu.core_type = #tpu.core_type<tc>, window_params = [{transform_indices = @transform_0, window_bounds = array<i64: 128, 3>}, {pipeline_mode = #tpu.pipeline_mode<synchronous>, transform_indices = @transform_1, window_bounds = array<i64: 32, 3>}, {pipeline_mode = #tpu.pipeline_mode<synchronous>, transform_indices = @transform_2, window_bounds = array<i64: 32, 1>}, {pipeline_mode = #tpu.pipeline_mode<synchronous>, transform_indices = @transform_3, window_bounds = array<i64: 32, 32>}, {pipeline_mode = #tpu.pipeline_mode<synchronous>, transform_indices = @transform_4, window_bounds = array<i64: 32, 1>}, {pipeline_mode = #tpu.pipeline_mode<synchronous>, transform_indices = @transform_5, window_bounds = array<i64: 1, 32>}, {pipeline_mode = #tpu.pipeline_mode<synchronous>, transform_indices = @transform_6, window_bounds = array<i64: 1, 1>}, {transform_indices = @transform_7, window_bounds = array<i64: 1, 128>}]} {
    %c0 = arith.constant 0 : index
    %c0_0 = arith.constant 0 : index
    %0 = vector.load %arg2[%c0, %c0_0] : memref<32x3xbf16, #tpu.memory_space<vmem>>, vector<32x3xbf16>
    %c0_1 = arith.constant 0 : index
    %c0_2 = arith.constant 0 : index
    %1 = vector.load %arg1[%c0_1, %c0_2] : memref<128x3xbf16, #tpu.memory_space<vmem>>, vector<128x3xbf16>
    %cst = arith.constant dense<0.000000e+00> : vector<32x128xf32>
    %2 = tpu.matmul %0, %1, %cst {dimension_numbers = #tpu.dot_dimension_numbers<[1], [1], [0], [0], [0, 0, 1, 0], [], []>} : vector<32x3xbf16>, vector<128x3xbf16>, vector<32x128xf32> -> vector<32x128xf32>
    %c0_3 = arith.constant 0 : index
    %c0_4 = arith.constant 0 : index
    %3 = vector.load %arg3[%c0_3, %c0_4] : memref<32x1xf32, #tpu.memory_space<vmem>>, vector<32x1xf32>
    %4 = vector.broadcast %3 : vector<32x1xf32> to vector<32x128xf32>
    %5 = arith.addf %2, %4 : vector<32x128xf32>
    %cst_5 = arith.constant 0.000000e+00 : f32
    %6 = vector.broadcast %cst_5 : f32 to vector<32x128xf32>
    %7 = arith.maximumf %5, %6 : vector<32x128xf32>
    %c0_6 = arith.constant 0 : index
    %c0_7 = arith.constant 0 : index
    %8 = vector.load %arg4[%c0_6, %c0_7] : memref<32x32xbf16, #tpu.memory_space<vmem>>, vector<32x32xbf16>
    %c0_8 = arith.constant 0 : index
    %c0_9 = arith.constant 0 : index
    %9 = vector.load %arg5[%c0_8, %c0_9] : memref<32x1xf32, #tpu.memory_space<vmem>>, vector<32x1xf32>
    %10 = arith.truncf %7 : vector<32x128xf32> to vector<32x128xbf16>
    %cst_10 = arith.constant dense<0.000000e+00> : vector<32x128xf32>
    %11 = tpu.matmul %8, %10, %cst_10 {dimension_numbers = #tpu.dot_dimension_numbers<[1], [0], [0], [1], [0, 0, 1, 1], [], []>} : vector<32x32xbf16>, vector<32x128xbf16>, vector<32x128xf32> -> vector<32x128xf32>
    %12 = vector.broadcast %9 : vector<32x1xf32> to vector<32x128xf32>
    %13 = arith.addf %11, %12 : vector<32x128xf32>
    %cst_11 = arith.constant 0.000000e+00 : f32
    %14 = vector.broadcast %cst_11 : f32 to vector<32x128xf32>
    %15 = arith.maximumf %13, %14 : vector<32x128xf32>
    %c0_12 = arith.constant 0 : index
    %c0_13 = arith.constant 0 : index
    %16 = vector.load %arg6[%c0_12, %c0_13] : memref<1x32xbf16, #tpu.memory_space<vmem>>, vector<1x32xbf16>
    %c0_14 = arith.constant 0 : index
    %c0_15 = arith.constant 0 : index
    %17 = vector.load %arg7[%c0_14, %c0_15] : memref<1x1xf32, #tpu.memory_space<vmem>>, vector<1x1xf32>
    %18 = arith.truncf %15 : vector<32x128xf32> to vector<32x128xbf16>
    %cst_16 = arith.constant dense<0.000000e+00> : vector<1x128xf32>
    %19 = tpu.matmul %16, %18, %cst_16 {dimension_numbers = #tpu.dot_dimension_numbers<[1], [0], [0], [1], [0, 0, 1, 1], [], []>} : vector<1x32xbf16>, vector<32x128xbf16>, vector<1x128xf32> -> vector<1x128xf32>
    %20 = vector.broadcast %17 : vector<1x1xf32> to vector<1x128xf32>
    %21 = arith.addf %19, %20 : vector<1x128xf32>
    %c0_17 = arith.constant 0 : index
    %c0_18 = arith.constant 0 : index
    %22 = vector.load %arg8[%c0_17, %c0_18] : memref<1x128xf32, #tpu.memory_space<vmem>>, vector<1x128xf32>
    tpu.vector_store %arg8[%c0_17, %c0_18], %21 {strides = array<i32>} : memref<1x128xf32, #tpu.memory_space<vmem>>, vector<1x128xf32>,
    return
  }
  func.func @transform_0(%arg0: i32) -> (i32, i32) {
    %c0_i32 = arith.constant 0 : i32
    %c0_i32_0 = arith.constant 0 : i32
    return %arg0, %c0_i32 : i32, i32
  }
  func.func @transform_1(%arg0: i32) -> (i32, i32) {
    %c0_i32 = arith.constant 0 : i32
    %c0_i32_0 = arith.constant 0 : i32
    %c0_i32_1 = arith.constant 0 : i32
    return %c0_i32, %c0_i32_0 : i32, i32
  }
  func.func @transform_2(%arg0: i32) -> (i32, i32) {
    %c0_i32 = arith.constant 0 : i32
    %c0_i32_0 = arith.constant 0 : i32
    %c0_i32_1 = arith.constant 0 : i32
    return %c0_i32, %c0_i32_0 : i32, i32
  }
  func.func @transform_3(%arg0: i32) -> (i32, i32) {
    %c0_i32 = arith.constant 0 : i32
    %c0_i32_0 = arith.constant 0 : i32
    %c0_i32_1 = arith.constant 0 : i32
    return %c0_i32, %c0_i32_0 : i32, i32
  }
  func.func @transform_4(%arg0: i32) -> (i32, i32) {
    %c0_i32 = arith.constant 0 : i32
    %c0_i32_0 = arith.constant 0 : i32
    %c0_i32_1 = arith.constant 0 : i32
    return %c0_i32, %c0_i32_0 : i32, i32
  }
  func.func @transform_5(%arg0: i32) -> (i32, i32) {
    %c0_i32 = arith.constant 0 : i32
    %c0_i32_0 = arith.constant 0 : i32
    %c0_i32_1 = arith.constant 0 : i32
    return %c0_i32, %c0_i32_0 : i32, i32
  }
  func.func @transform_6(%arg0: i32) -> (i32, i32) {
    %c0_i32 = arith.constant 0 : i32
    %c0_i32_0 = arith.constant 0 : i32
    %c0_i32_1 = arith.constant 0 : i32
    return %c0_i32, %c0_i32_0 : i32, i32
  }
  func.func @transform_7(%arg0: i32) -> (i32, i32) {
    %c0_i32 = arith.constant 0 : i32
    %c0_i32_0 = arith.constant 0 : i32
    return %c0_i32, %arg0 : i32, i32
  }
}

</mosaic_0001>

<llo_original>
// kernel: tpu_custom_call.1
$region0: #{tpu_custom_call.1}
  #allocation0 [shape = 'u32[]', space=smem, size = 0x4, offset = 0x4, fixed_abs, tag = 'smem constant byte address 0x4 - core index']
  #allocation1 [shape = 'u32[72,128]{1,0:T(1,128)}', space=vmem, size = 0x9000, scoped, tag = 'internal scratch']
  #allocation2 [shape = 'f32[1,1]{1,0:T(1,128)S(1)}', space=vmem, size = 0x200, scoped, tag = 'scoped memory for tpu_custom_call.1']
  %s0 = inlined_call_operand.vmem [shape: bf16[128,3], index: 0, kind: input, shape index: {}]
  %s1 = inlined_call_operand.vmem [shape: bf16[32,3], index: 1, kind: input, shape index: {}]
  %s2 = inlined_call_operand.vmem [shape: f32[32,1], index: 2, kind: input, shape index: {}]
  %s3 = inlined_call_operand.vmem [shape: bf16[32,32], index: 3, kind: input, shape index: {}]
  %s4 = inlined_call_operand.vmem [shape: f32[32,1], index: 4, kind: input, shape index: {}]
  %s5 = inlined_call_operand.vmem [shape: bf16[1,32], index: 5, kind: input, shape index: {}]
  %s6 = inlined_call_operand.<no memory space> [shape: f32[1,1], index: 6, kind: input, shape index: {}]
  %s7 = inlined_call_operand.hbm [shape: f32[1,128], index: 7, kind: output, shape index: {}]
  %s8 = sld [smem:[#allocation0]]
  $region38: #{tpu_custom_call.1} parent=0
    _
  %s10 = ssub.s32 1, %s8
  %s11 = scalar_select 0, %s10, %s8
  %v12 = vstv %s6
  %13 = vst [vmem:[#allocation2] sm:$0x1] %v12
  $region1: #{tpu_custom_call.1} parent=0
    #allocation3 [shape = 'u8[512]{0}', space=vmem, size = 0x400, scoped, tag = 'output window, operand 0, single buffered']
    #allocation4 [shape = 's32[1]{0}', space=sflag, size = 0x4, scoped, tag = 'scoped memory for tpu_custom_call.1']
    %14 = vsyncpa [#allocation4], 0
    // Predicated region
    $region2: #{tpu_custom_call.1} parent=1 // pred_check
      _
    $region3: #{tpu_custom_call.1} parent=1 // pred_check_branch
      %16 = sbr.rel (0) target = $region5
    $region4: #{tpu_custom_call.1} parent=1 // pred_region
      _
    $region5: #{tpu_custom_call.1} parent=1 // pred_fallthru
      _
    // Predicated region
    $region6: #{tpu_custom_call.1} parent=1 // pred_check
      _
    $region7: #{tpu_custom_call.1} parent=1 // pred_check_branch
      %18 = sbr.rel (0) target = $region9
    $region8: #{tpu_custom_call.1} parent=1 // pred_region
      _
    $region9: #{tpu_custom_call.1} parent=1 // pred_fallthru
      _
    // Predicated region
    $region10: #{tpu_custom_call.1} parent=1 // pred_check
      _
    $region11: #{tpu_custom_call.1} parent=1 // pred_check_branch
      %20 = sbr.rel (0) target = $region13
    $region12: #{tpu_custom_call.1} parent=1 // pred_region
      _
    $region13: #{tpu_custom_call.1} parent=1 // pred_fallthru
      _
    // Predicated region
    $region14: #{tpu_custom_call.1} parent=1 // pred_check
      _
    $region15: #{tpu_custom_call.1} parent=1 // pred_check_branch
      %22 = sbr.rel (0) target = $region17
    $region16: #{tpu_custom_call.1} parent=1 // pred_region
      _
    $region17: #{tpu_custom_call.1} parent=1 // pred_fallthru
      _
    // Predicated region
    $region18: #{tpu_custom_call.1} parent=1 // pred_check
      _
    $region19: #{tpu_custom_call.1} parent=1 // pred_check_branch
      %24 = sbr.rel (0) target = $region21
    $region20: #{tpu_custom_call.1} parent=1 // pred_region
      _
    $region21: #{tpu_custom_call.1} parent=1 // pred_fallthru
      _
    // Predicated region
    $region22: #{tpu_custom_call.1} parent=1 // pred_check
      _
    $region23: #{tpu_custom_call.1} parent=1 // pred_check_branch
      %26 = sbr.rel (0) target = $region25
    $region24: #{tpu_custom_call.1} parent=1 // pred_region
      _
    $region25: #{tpu_custom_call.1} parent=1 // pred_fallthru
      _
    // Predicated region
    $region26: #{tpu_custom_call.1} parent=1 // pred_check
      _
    $region27: #{tpu_custom_call.1} parent=1 // pred_check_branch
      %28 = sbr.rel (0) target = $region29
    $region28: #{tpu_custom_call.1} parent=1 // pred_region
      _
    $region29: #{tpu_custom_call.1} parent=1 // pred_fallthru
      _
    %v30 = vld [vmem:[%s1] sm:$0xf]
    %v31 = vld [vmem:[%s1 + $0x4] sm:$0xf]
    %v32 = vld [vmem:[%s1 + $0x8] sm:$0xf]
    %v33 = vld [vmem:[%s1 + $0xc] sm:$0xf]
    %v34 = vld [vmem:[%s0] sm:$0xf]
    %v35 = vld [vmem:[%s0 + $0x4] sm:$0xf]
    %v36 = vld [vmem:[%s0 + $0x8] sm:$0xf]
    %v37 = vld [vmem:[%s0 + $0xc] sm:$0xf]
    %v38 = vld [vmem:[%s0 + $0x10] sm:$0xf]
    %v39 = vld [vmem:[%s0 + $0x14] sm:$0xf]
    %v40 = vld [vmem:[%s0 + $0x18] sm:$0xf]
    %v41 = vld [vmem:[%s0 + $0x1c] sm:$0xf]
    %v42 = vld [vmem:[%s0 + $0x20] sm:$0xf]
    %v43 = vld [vmem:[%s0 + $0x24] sm:$0xf]
    %v44 = vld [vmem:[%s0 + $0x28] sm:$0xf]
    %v45 = vld [vmem:[%s0 + $0x2c] sm:$0xf]
    %v46 = vld [vmem:[%s0 + $0x30] sm:$0xf]
    %v47 = vld [vmem:[%s0 + $0x34] sm:$0xf]
    %v48 = vld [vmem:[%s0 + $0x38] sm:$0xf]
    %v49 = vld [vmem:[%s0 + $0x3c] sm:$0xf]
    %v50 = vld [vmem:[%s2] sm:$0xff]
    %v51 = vld [vmem:[%s2 + $0x8] sm:$0xff]
    %v52 = vld [vmem:[%s2 + $0x10] sm:$0xff]
    %v53 = vld [vmem:[%s2 + $0x18] sm:$0xff]
    %55 = vset.pattern.permute.xlu0 0
    %56 = vperm.xlu0 %55, %v50
    %v57 = vpop.permute.xlu0 %56
    %60 = vset.pattern.permute.xlu0 0
    %61 = vperm.xlu0 %60, %v51
    %v62 = vpop.permute.xlu0 %61
    %65 = vset.pattern.permute.xlu0 0
    %66 = vperm.xlu0 %65, %v52
    %v67 = vpop.permute.xlu0 %66
    %70 = vset.pattern.permute.xlu0 0
    %71 = vperm.xlu0 %70, %v53
    %v72 = vpop.permute.xlu0 %71
    %v78 = vunpack.c.l.b16 %v30
    %v79 = vunpack.c.l.b16 %v31
    %v80 = vunpack.c.l.b16 %v32
    %v81 = vunpack.c.l.b16 %v33
    %v82 = vpack.c.b16 %v79, %v78
    %v83 = vpack.c.b16 %v81, %v80
    %v100 = vunpack.c.l.b16 %v34
    %v101 = vunpack.c.l.b16 %v35
    %v102 = vunpack.c.l.b16 %v36
    %v103 = vunpack.c.l.b16 %v37
    %v104 = vunpack.c.l.b16 %v38
    %v105 = vunpack.c.l.b16 %v39
    %v106 = vunpack.c.l.b16 %v40
    %v107 = vunpack.c.l.b16 %v41
    %v108 = vunpack.c.l.b16 %v42
    %v109 = vunpack.c.l.b16 %v43
    %v110 = vunpack.c.l.b16 %v44
    %v111 = vunpack.c.l.b16 %v45
    %v112 = vunpack.c.l.b16 %v46
    %v113 = vunpack.c.l.b16 %v47
    %v114 = vunpack.c.l.b16 %v48
    %v115 = vunpack.c.l.b16 %v49
    %v116 = vpack.c.b16 %v101, %v100
    %v117 = vpack.c.b16 %v103, %v102
    %v118 = vpack.c.b16 %v105, %v104
    %v119 = vpack.c.b16 %v107, %v106
    %v120 = vpack.c.b16 %v109, %v108
    %v121 = vpack.c.b16 %v111, %v110
    %v122 = vpack.c.b16 %v113, %v112
    %v123 = vpack.c.b16 %v115, %v114
    %vm124 = vcmask 23552
    %v126 = vsel %vm124, %v82, 0
    %v129 = vsel %vm124, %v83, 0
    %v132 = vsel %vm124, %v116, 0
    %v135 = vsel %vm124, %v117, 0
    %v138 = vsel %vm124, %v118, 0
    %v141 = vsel %vm124, %v119, 0
    %v144 = vsel %vm124, %v120, 0
    %v147 = vsel %vm124, %v121, 0
    %v150 = vsel %vm124, %v122, 0
    %v153 = vsel %vm124, %v123, 0
    %155 = vmatpush.bf16.xpose.msra.mxu0 %v153
    %156 = vmatpush.bf16.xpose.msra.mxu0 %v150
    %157 = vmatpush.bf16.xpose.msra.mxu0 %v147
    %158 = vmatpush.bf16.xpose.msra.mxu0 %v144
    %159 = vmatpush.bf16.xpose.msra.mxu0 %v141
    %160 = vmatpush.bf16.xpose.msra.mxu0 %v138
    %161 = vmatpush.bf16.xpose.msra.mxu0 %v135
    %162 = vmatpush.bf16.xpose.msra.mxu0 %v132
    %163 = vmatmul.bf16.gmra.mxu0 %v126
    %v164 = vpop.f32.mrf.mxu0
    %v165 = vadd.f32 %v57, %v164
    %v166 = vpop.f32.mrf.mxu0
    %v167 = vadd.f32 %v62, %v166
    %168 = vmatmul.bf16.gmra.mxu0 %v129
    %v169 = vpop.f32.mrf.mxu0
    %v170 = vadd.f32 %v67, %v169
    %v171 = vpop.f32.mrf.mxu0
    %v172 = vadd.f32 %v72, %v171
    %173 = vdwg.mxu0
    %v174 = vmax.f32 %v165, 0.0
    %v175 = vmax.f32 %v167, 0.0
    %v176 = vmax.f32 %v170, 0.0
    %v177 = vmax.f32 %v172, 0.0
    %v178 = vld [vmem:[%s3] sm:$0xf]
    %v179 = vld [vmem:[%s3 + $0x4] sm:$0xf]
    %v180 = vld [vmem:[%s3 + $0x8] sm:$0xf]
    %v181 = vld [vmem:[%s3 + $0xc] sm:$0xf]
    %v182 = vld [vmem:[%s4] sm:$0xff]
    %v183 = vld [vmem:[%s4 + $0x8] sm:$0xff]
    %v184 = vld [vmem:[%s4 + $0x10] sm:$0xff]
    %v185 = vld [vmem:[%s4 + $0x18] sm:$0xff]
    %v186 = vpack.c.bf16 %v175, %v174
    %v187 = vpack.c.bf16 %v177, %v176
    %189 = vset.pattern.permute.xlu0 0
    %190 = vperm.xlu0 %189, %v182
    %v191 = vpop.permute.xlu0 %190
    %194 = vset.pattern.permute.xlu0 0
    %195 = vperm.xlu0 %194, %v183
    %v196 = vpop.permute.xlu0 %195
    %199 = vset.pattern.permute.xlu0 0
    %200 = vperm.xlu0 %199, %v184
    %v201 = vpop.permute.xlu0 %200
    %204 = vset.pattern.permute.xlu0 0
    %205 = vperm.xlu0 %204, %v185
    %v206 = vpop.permute.xlu0 %205
    %v212 = vunpack.c.l.b16 %v178
    %v213 = vunpack.c.l.b16 %v179
    %v214 = vunpack.c.l.b16 %v180
    %v215 = vunpack.c.l.b16 %v181
    %v216 = vpack.c.b16 %v213, %v212
    %v217 = vpack.c.b16 %v215, %v214
    %vm218 = vcmask 261120
    %v220 = vsel %vm218, %v216, 0
    %v223 = vsel %vm218, %v217, 0
    %225 = vmatpush.bf16.msra.mxu0 0
    %226 = vmatpush.bf16.msra.mxu0 0
    %227 = vmatpush.bf16.msra.mxu0 0
    %228 = vmatpush.bf16.msra.mxu0 0
    %229 = vmatpush.bf16.msra.mxu0 0
    %230 = vmatpush.bf16.msra.mxu0 0
    %231 = vmatpush.bf16.msra.mxu0 %v187
    %232 = vmatpush.bf16.msra.mxu0 %v186
    %233 = vmatmul.bf16.gmra.mxu0 %v220
    %v234 = vpop.f32.mrf.mxu0
    %v235 = vadd.f32 %v191, %v234
    %v236 = vpop.f32.mrf.mxu0
    %v237 = vadd.f32 %v196, %v236
    %238 = vmatmul.bf16.gmra.mxu0 %v223
    %v239 = vpop.f32.mrf.mxu0
    %v240 = vadd.f32 %v201, %v239
    %v241 = vpop.f32.mrf.mxu0
    %v242 = vadd.f32 %v206, %v241
    %243 = vdwg.mxu0
    %v244 = vmax.f32 %v235, 0.0
    %v245 = vmax.f32 %v237, 0.0
    %v246 = vmax.f32 %v240, 0.0
    %v247 = vmax.f32 %v242, 0.0
    %v248 = vld [vmem:[%s5] sm:$0x1]
    %v249 = vld [vmem:[#allocation2] sm:$0x1]
    %v250 = vpack.c.bf16 %v245, %v244
    %v251 = vpack.c.bf16 %v247, %v246
    %253 = vset.pattern.permute.xlu0 0
    %254 = vperm.xlu0 %253, %v249
    %v255 = vpop.permute.xlu0 %254
    %v257 = vperm.slane %v255, 0
    %v259 = vsel %vm218, %v248, 0
    %261 = vmatpush.bf16.msra.mxu0 0
    %262 = vmatpush.bf16.msra.mxu0 0
    %263 = vmatpush.bf16.msra.mxu0 0
    %264 = vmatpush.bf16.msra.mxu0 0
    %265 = vmatpush.bf16.msra.mxu0 0
    %266 = vmatpush.bf16.msra.mxu0 0
    %267 = vmatpush.bf16.msra.mxu0 %v251
    %268 = vmatpush.bf16.msra.mxu0 %v250
    %269 = vmatmul.bf16.gmra.mxu0 %v259
    %v270 = vpop.f32.mrf.mxu0
    %v271 = vadd.f32 %v257, %v270
    %v272 = vpop.f32.mrf.mxu0
    %273 = vdwg.mxu0
    %274 = vst [vmem:[#allocation3] sm:$0x1] %v271
    // Predicated region
    $region30: #{tpu_custom_call.1} parent=1 // pred_check
      _
    $region31: #{tpu_custom_call.1} parent=1 // pred_check_branch
      %276 = sbr.rel (0) target = $region33
    $region32: #{tpu_custom_call.1} parent=1 // pred_region
      %278 = vsyncadd [#allocation4], 0
      %s280 = sshll.u32 [#allocation3], 4
      %s281 = int_to_ptr.vmem [resolvable:$true] %s280
      %s282 = sshll.u32 %s7, 4
      %s283 = int_to_ptr.hbm [resolvable:$true] %s282
      %285 = dma.vmem_to_hbm [thread:$0]  %s281, 16, %s283, [#allocation4]
    $region33: #{tpu_custom_call.1} parent=1 // pred_fallthru
      _
    // Predicated region
    $region34: #{tpu_custom_call.1} parent=1 // pred_check
      _
    $region35: #{tpu_custom_call.1} parent=1 // pred_check_branch
      %287 = sbr.rel (0) target = $region37
    $region36: #{tpu_custom_call.1} parent=1 // pred_region
      %289 = dma.done [#allocation4], 16
    $region37: #{tpu_custom_call.1} parent=1 // pred_fallthru
      _
    %290 = vsyncpa [#allocation4], 1

</llo_original>
